<compile_context>
chip_gen: v7x
topology: tpu7x:2x2x1
jax: 0.10.0
libtpu: 0.0.40
codegen_flags: <defaults>
</compile_context>

<pallas_src>
import numpy as np
import jax
import jax.numpy as jnp
from jax.experimental import pallas as pl
from jax.experimental.pallas import tpu as pltpu


# --------------------- packing (run ONCE, outside the hot loop) --------------

def pack_rho(srho_re, srho_im):
    """Pack sqrt_rho^T.conj() (rank, dim) into B'^T of shape (2*dim, 2*rank).

    With A' = [Ar | Ai] (rows, 2*rank), B' = [[Br, Bi], [-Bi, Br]]:
        A' @ B' = [real(A@B) | imag(A@B)]
    We return B'^T so the kernel can compute (A'@B')^T = B'^T @ A'^T directly.
    Build this once per density matrix."""
    f32 = jnp.float32
    br = jnp.asarray(srho_re, f32)
    bi = jnp.asarray(srho_im, f32)
    top = jnp.concatenate([br, bi], axis=1)          # (rank, 2*dim)
    bot = jnp.concatenate([-bi, br], axis=1)         # (rank, 2*dim)
    b_packed = jnp.concatenate([top, bot], axis=0)   # (2*rank, 2*dim)
    return b_packed.T                                # (2*dim, 2*rank)


def pack_stiefel(mat_st_re, mat_st_im):
    """Pack (B, num_term, rank) [or (num_term, rank)] Stiefel point(s) into
    A'^T of shape (2*rank, B*num_term).  Build once per candidate set."""
    f32 = jnp.float32
    re = jnp.asarray(mat_st_re, f32)
    im = jnp.asarray(mat_st_im, f32)
    if re.ndim == 2:
        re, im = re[None], im[None]
    B, num_term, rank = re.shape
    a = jnp.concatenate([re.reshape(B * num_term, rank),
                         im.reshape(B * num_term, rank)], axis=1)  # (rows, 2*rank)
    return a.T                                                     # (2*rank, rows)


# ------------------------------- kernel --------------------------------------

def _make_coherence_kernel(dim, num_term, batch_block, rows_block, temperature):
    use_temp = temperature is not None
    t = float(temperature) if use_temp else 0.0
    inv_t = (1.0 / t) if use_temp else 0.0

    def kernel(b_ref, a_ref, out_ref):
        # One fused complex matmul (transposed / lane-dense layout):
        #   res = B'^T @ A'^T   -> (2*dim, rows_block)
        #   rows 0:dim  -> real part, rows dim:2*dim -> imag part.
        res = jnp.dot(b_ref[...], a_ref[...],
                      precision=jax.lax.Precision.HIGHEST,
                      preferred_element_type=jnp.float32)
        tr = res[:dim, :]
        ti = res[dim:, :]
        p = tr * tr + ti * ti                         # (dim, rows_block), lane-dense

        if use_temp:
            q = p * inv_t
            m = jnp.max(q, axis=0, keepdims=True)     # (1, rows_block)
            val = m + jnp.log(jnp.sum(jnp.exp(q - m), axis=0, keepdims=True))
        else:
            val = jnp.max(p, axis=0, keepdims=True)   # (1, rows_block)

        # Vectorized per-batch-element sum over its num_term contiguous lanes
        # (replaces the old per-element Python loop + scalar stores).
        lane = jax.lax.broadcasted_iota(jnp.int32, (batch_block, rows_block), 1)
        bidx = jax.lax.broadcasted_iota(jnp.int32, (batch_block, rows_block), 0)
        lo = bidx * num_term
        mask = ((lane >= lo) & (lane < lo + num_term)).astype(jnp.float32)
        per = jnp.sum(mask * val, axis=1, keepdims=True)   # (batch_block, 1)

        if use_temp:
            out_ref[...] = 1.0 - t * per
        else:
            out_ref[...] = 1.0 - per

    return kernel


# ------------------------------- wrapper --------------------------------------

def geometric_coherence(aT_packed, bT_packed, *, num_term, temperature=None,
                        batch_block=None):
    """Batched GeometricCoherenceModel.forward on packed inputs.

    aT_packed : (2*rank, B*num_term)  from pack_stiefel (once per candidate set)
    bT_packed : (2*dim, 2*rank)       from pack_rho     (once per density matrix)
    Returns (B,) float32:
        1 - T * sum_a logsumexp_i(p_ai / T)   (or the max branch if temperature is None)
    """
    two_rank, rows = aT_packed.shape
    two_dim, two_rank_b = bT_packed.shape
    assert two_rank_b == two_rank
    dim = two_dim // 2
    assert rows % num_term == 0
    B = rows // num_term
    if temperature is not None and not (float(temperature) > 0.0):
        raise ValueError("temperature must be > 0 or None")

    if batch_block is None:
        batch_block = B          # single fat grid step: amortize per-step overhead
    assert B % batch_block == 0
    n_blocks = B // batch_block
    rows_block = batch_block * num_term
    if n_blocks > 1:
        # lane/sublane alignment for the transposed layout when blocking
        assert rows_block % 128 == 0 and batch_block % 8 == 0, (
            "with n_blocks > 1, batch_block*num_term must be a multiple of 128 "
            "and batch_block a multiple of 8")
    # TODO(synk): if dim is not a multiple of 8, pad srho columns so the
    # real/imag sublane split stays tile-aligned.

    kernel = _make_coherence_kernel(dim, num_term, batch_block, rows_block,
                                    temperature)
    cost = pl.CostEstimate(
        flops=2 * rows * two_rank * two_dim + 6 * dim * rows,
        transcendentals=(dim + 1) * rows if temperature is not None else 0,
        bytes_accessed=4 * (rows * two_rank + two_rank * two_dim + B),
    )
    out = pl.pallas_call(
        kernel,
        out_shape=jax.ShapeDtypeStruct((B, 1), jnp.float32),
        grid_spec=pltpu.PrefetchScalarGridSpec(
            num_scalar_prefetch=0,
            grid=(n_blocks,),
            in_specs=[
                pl.BlockSpec((two_dim, two_rank), lambda i: (0, 0)),     # shared rho
                pl.BlockSpec((two_rank, rows_block), lambda i: (0, i)),  # batch block
            ],
            out_specs=pl.BlockSpec((batch_block, 1), lambda i: (i, 0)),
        ),
        compiler_params=pltpu.CompilerParams(
            dimension_semantics=(("parallel",) if n_blocks > 1 else ("arbitrary",)),
        ),
        cost_estimate=cost,
    )(bT_packed, aT_packed)
    return out[:, 0]


# ------------------------- parameter setup (host glue) ------------------------

def _stiefel_polar(a):
    """Polar retraction onto the Stiefel manifold: A @ (A^H A)^{-1/2}."""
    h = a.conj().T @ a
    w, v = np.linalg.eigh(h)
    inv_sqrt = (v * (1.0 / np.sqrt(w))) @ v.conj().T
    return a @ inv_sqrt


if __name__ == "__main__":
    dim, num_term = 16, 32
    rank = dim                 # default rank = dim
    temperature = 0.1
    batch = 8                  # B candidate Stiefel points evaluated per call

    key = jax.random.PRNGKey(0)
    k_rho_r, k_rho_i, k_st = jax.random.split(key, 3)

    # Deterministic valid density matrix rho, then set_density_matrix logic
    # (f64 host glue, as in the torch module).
    br_ = np.asarray(jax.random.normal(k_rho_r, (dim, dim)), dtype=np.float64)
    bi_ = np.asarray(jax.random.normal(k_rho_i, (dim, dim)), dtype=np.float64)
    bmat = br_ + 1j * bi_
    rho = bmat @ bmat.conj().T
    rho = rho / np.trace(rho).real
    evl, evc = np.linalg.eigh(rho)
    evl = np.maximum(0.0, evl[-rank:])
    evc = evc[:, -rank:]
    sqrt_rho_Tconj = ((evc * np.sqrt(evl)).reshape(dim, rank)).T.conj()   # (rank, dim)

    # Batch of Stiefel manifold points (polar retraction).
    # TODO(synk): numqi's Stiefel parametrization details differ slightly; a
    # deterministic Gaussian seed + polar retraction yields the same manifold.
    st_keys = jax.random.split(k_st, batch)
    mats = []
    for k in st_keys:
        kr, ki = jax.random.split(k)
        a = (np.asarray(jax.random.normal(kr, (num_term, rank)), dtype=np.float64)
             + 1j * np.asarray(jax.random.normal(ki, (num_term, rank)), dtype=np.float64))
        mats.append(_stiefel_polar(a))
    mat_st = np.stack(mats, axis=0)                                  # (B, num_term, rank)

    # Pack ONCE: rho once per density matrix, A once per candidate set.
    bT = jax.block_until_ready(pack_rho(sqrt_rho_Tconj.real, sqrt_rho_Tconj.imag))
    aT = jax.block_until_ready(pack_stiefel(mat_st.real, mat_st.imag))

    out_t = jax.block_until_ready(
        geometric_coherence(aT, bT, num_term=num_term, temperature=temperature))
    out_m = jax.block_until_ready(
        geometric_coherence(aT, bT, num_term=num_term, temperature=None))

    # numpy float64 reference of the exact torch forward, per batch element
    tmp0 = mat_st @ sqrt_rho_Tconj                                   # (B, num_term, dim)
    p = tmp0.real ** 2 + tmp0.imag ** 2
    q = p / temperature
    m = q.max(axis=2, keepdims=True)
    lse = m[..., 0] + np.log(np.exp(q - m).sum(axis=2))
    ref_t = 1.0 - temperature * lse.sum(axis=1)
    ref_m = 1.0 - p.max(axis=2).sum(axis=1)

    assert np.allclose(np.asarray(out_t, dtype=np.float64), ref_t,
                       rtol=1e-4, atol=1e-4), (out_t, ref_t)
    assert np.allclose(np.asarray(out_m, dtype=np.float64), ref_m,
                       rtol=1e-4, atol=1e-4), (out_m, ref_m)
    print("KERNEL_OK")
</pallas_src>

<mosaic_0001>
module attributes {stable_mosaic.version = 11 : i64} {
  func.func @kernel(%arg0: i32, %arg1: memref<32x32xf32, #tpu.memory_space<vmem>>, %arg2: memref<32x256xf32, #tpu.memory_space<vmem>>, %arg3: memref<8x1xf32, #tpu.memory_space<vmem>>) attributes {dimension_semantics = [#tpu.dimension_semantics<arbitrary>], iteration_bounds = array<i64: 1>, scalar_prefetch = 0 : i64, scratch_operands = 0 : i64, tpu.core_type = #tpu.core_type<tc>, window_params = [{pipeline_mode = #tpu.pipeline_mode<synchronous>, transform_indices = @transform_0, window_bounds = array<i64: 32, 32>}, {transform_indices = @transform_1, window_bounds = array<i64: 32, 256>}, {transform_indices = @transform_2, window_bounds = array<i64: 8, 1>}]} {
    %c0 = arith.constant 0 : index
    %c0_0 = arith.constant 0 : index
    %0 = vector.load %arg1[%c0, %c0_0] : memref<32x32xf32, #tpu.memory_space<vmem>>, vector<32x32xf32>
    %c0_1 = arith.constant 0 : index
    %c0_2 = arith.constant 0 : index
    %1 = vector.load %arg2[%c0_1, %c0_2] : memref<32x256xf32, #tpu.memory_space<vmem>>, vector<32x256xf32>
    %cst = arith.constant dense<0.000000e+00> : vector<32x256xf32>
    %2 = tpu.matmul %0, %1, %cst {dimension_numbers = #tpu.dot_dimension_numbers<[1], [0], [0], [1], [0, 0, 1, 1], [], []>, precision = #tpu.contract_precision<fp32>} : vector<32x32xf32>, vector<32x256xf32>, vector<32x256xf32> -> vector<32x256xf32>
    %3 = vector.extract_strided_slice %2 {offsets = [0, 0], sizes = [16, 256], strides = [1, 1]} : vector<32x256xf32> to vector<16x256xf32>
    %4 = vector.extract_strided_slice %2 {offsets = [16, 0], sizes = [16, 256], strides = [1, 1]} : vector<32x256xf32> to vector<16x256xf32>
    %5 = arith.mulf %3, %3 : vector<16x256xf32>
    %6 = arith.mulf %4, %4 : vector<16x256xf32>
    %7 = arith.addf %5, %6 : vector<16x256xf32>
    %cst_3 = arith.constant 1.000000e+01 : f32
    %8 = vector.broadcast %cst_3 : f32 to vector<16x256xf32>
    %9 = arith.mulf %7, %8 : vector<16x256xf32>
    %cst_4 = arith.constant dense<0xFF800000> : vector<256xf32>
    %10 = vector.multi_reduction <maximumf>, %9, %cst_4 [0] : vector<16x256xf32> to vector<256xf32>
    %11 = vector.shape_cast %10 : vector<256xf32> to vector<1x256xf32>
    %12 = vector.broadcast %11 : vector<1x256xf32> to vector<16x256xf32>
    %13 = arith.subf %9, %12 : vector<16x256xf32>
    %14 = math.exp %13 : vector<16x256xf32>
    %cst_5 = arith.constant dense<0.000000e+00> : vector<256xf32>
    %15 = vector.multi_reduction <add>, %14, %cst_5 [0] : vector<16x256xf32> to vector<256xf32>
    %16 = vector.shape_cast %15 : vector<256xf32> to vector<1x256xf32>
    %17 = math.log %16 : vector<1x256xf32>
    %18 = arith.addf %11, %17 : vector<1x256xf32>
    %19 = tpu.iota {dimensions = array<i32: 1>} : vector<8x256xi32>
    %20 = tpu.iota {dimensions = array<i32: 0>} : vector<8x256xi32>
    %c32_i32 = arith.constant 32 : i32
    %21 = vector.broadcast %c32_i32 : i32 to vector<8x256xi32>
    %22 = arith.muli %20, %21 : vector<8x256xi32>
    %23 = arith.cmpi sge, %19, %22 : vector<8x256xi32>
    %c32_i32_6 = arith.constant 32 : i32
    %24 = vector.broadcast %c32_i32_6 : i32 to vector<8x256xi32>
    %25 = arith.addi %22, %24 : vector<8x256xi32>
    %26 = arith.cmpi slt, %19, %25 : vector<8x256xi32>
    %27 = arith.andi %23, %26 : vector<8x256xi1>
    %28 = arith.extui %27 : vector<8x256xi1> to vector<8x256xi32>
    %29 = arith.sitofp %28 : vector<8x256xi32> to vector<8x256xf32>
    %30 = vector.broadcast %18 : vector<1x256xf32> to vector<8x256xf32>
    %31 = arith.mulf %29, %30 : vector<8x256xf32>
    %cst_7 = arith.constant dense<0.000000e+00> : vector<8xf32>
    %32 = vector.multi_reduction <add>, %31, %cst_7 [1] : vector<8x256xf32> to vector<8xf32>
    %33 = vector.shape_cast %32 : vector<8xf32> to vector<8x1xf32>
    %cst_8 = arith.constant 1.000000e-01 : f32
    %34 = vector.broadcast %cst_8 : f32 to vector<8x1xf32>
    %35 = arith.mulf %34, %33 : vector<8x1xf32>
    %cst_9 = arith.constant 1.000000e+00 : f32
    %36 = vector.broadcast %cst_9 : f32 to vector<8x1xf32>
    %37 = arith.subf %36, %35 : vector<8x1xf32>
    %c0_10 = arith.constant 0 : index
    %c0_11 = arith.constant 0 : index
    %38 = vector.load %arg3[%c0_10, %c0_11] : memref<8x1xf32, #tpu.memory_space<vmem>>, vector<8x1xf32>
    tpu.vector_store %arg3[%c0_10, %c0_11], %37 {strides = array<i32>} : memref<8x1xf32, #tpu.memory_space<vmem>>, vector<8x1xf32>,
    return
  }
  func.func @transform_0(%arg0: i32) -> (i32, i32) {
    %c0_i32 = arith.constant 0 : i32
    %c0_i32_0 = arith.constant 0 : i32
    %c0_i32_1 = arith.constant 0 : i32
    return %c0_i32, %c0_i32_0 : i32, i32
  }
  func.func @transform_1(%arg0: i32) -> (i32, i32) {
    %c0_i32 = arith.constant 0 : i32
    %c0_i32_0 = arith.constant 0 : i32
    return %c0_i32, %arg0 : i32, i32
  }
  func.func @transform_2(%arg0: i32) -> (i32, i32) {
    %c0_i32 = arith.constant 0 : i32
    %c0_i32_0 = arith.constant 0 : i32
    return %arg0, %c0_i32 : i32, i32
  }
}

</mosaic_0001>

<llo_original>
// kernel: tpu_custom_call.1
$region0: #{tpu_custom_call.1}
  #allocation0 [shape = 'u32[]', space=smem, size = 0x4, offset = 0x4, fixed_abs, tag = 'smem constant byte address 0x4 - core index']
  #allocation1 [shape = 'u32[144,128]{1,0:T(1,128)}', space=vmem, size = 0x12000, scoped, tag = 'internal scratch']
  %s0 = inlined_call_operand.hbm [shape: f32[32,32], index: 0, kind: input, shape index: {}]
  %s1 = inlined_call_operand.hbm [shape: f32[32,256], index: 1, kind: input, shape index: {}]
  %s2 = inlined_call_operand.vmem [shape: f32[8,1], index: 2, kind: output, shape index: {}]
  %s3 = sld [smem:[#allocation0]]
  $region26: #{tpu_custom_call.1} parent=0
    _
  %s5 = ssub.s32 1, %s3
  %s6 = scalar_select 0, %s5, %s3
  $region1: #{tpu_custom_call.1} parent=0
    #allocation2 [shape = 'u8[16384]{0}', space=vmem, size = 0x4000, scoped, tag = 'input window, operand 0, single buffered']
    #allocation3 [shape = 's32[1]{0}', space=sflag, size = 0x4, scoped, tag = 'scoped memory for tpu_custom_call.1']
    #allocation4 [shape = 'u8[32768]{0}', space=vmem, size = 0x8000, scoped, tag = 'input window, operand 1, single buffered']
    #allocation5 [shape = 's32[1]{0}', space=sflag, size = 0x4, scoped, tag = 'scoped memory for tpu_custom_call.1']
    %7 = vsyncpa [#allocation3], 0
    %8 = vsyncpa [#allocation5], 0
    // Predicated region
    $region2: #{tpu_custom_call.1} parent=1 // pred_check
      _
    $region3: #{tpu_custom_call.1} parent=1 // pred_check_branch
      %10 = sbr.rel (0) target = $region5
    $region4: #{tpu_custom_call.1} parent=1 // pred_region
      %s12 = ssub.s32 512, 512
      %13 = vsyncadd [#allocation3], %s12
      %s14 = sshll.u32 [#allocation2], 4
      %s15 = int_to_ptr.vmem [resolvable:$true] %s14
      %20 = dma.hbm_to_vmem [thread:$0]  %s0, 512, %s15, [#allocation3], 128, 128, 8
    $region5: #{tpu_custom_call.1} parent=1 // pred_fallthru
      _
    // Predicated region
    $region6: #{tpu_custom_call.1} parent=1 // pred_check
      _
    $region7: #{tpu_custom_call.1} parent=1 // pred_check_branch
      %22 = sbr.rel (0) target = $region9
    $region8: #{tpu_custom_call.1} parent=1 // pred_region
      %s24 = ssub.s32 1024, 1024
      %25 = vsyncadd [#allocation5], %s24
      %s26 = sshll.u32 [#allocation4], 4
      %s27 = int_to_ptr.vmem [resolvable:$true] %s26
      %32 = dma.hbm_to_vmem [thread:$0]  %s1, 1024, %s27, [#allocation5], 256, 256, 16
    $region9: #{tpu_custom_call.1} parent=1 // pred_fallthru
      _
    // Predicated region
    $region10: #{tpu_custom_call.1} parent=1 // pred_check
      _
    $region11: #{tpu_custom_call.1} parent=1 // pred_check_branch
      %34 = sbr.rel (0) target = $region13
    $region12: #{tpu_custom_call.1} parent=1 // pred_region
      %35 = dma.done [#allocation3], 512
    $region13: #{tpu_custom_call.1} parent=1 // pred_fallthru
      _
    // Predicated region
    $region14: #{tpu_custom_call.1} parent=1 // pred_check
      _
    $region15: #{tpu_custom_call.1} parent=1 // pred_check_branch
      %37 = sbr.rel (0) target = $region17
    $region16: #{tpu_custom_call.1} parent=1 // pred_region
      %38 = dma.done [#allocation5], 1024
    $region17: #{tpu_custom_call.1} parent=1 // pred_fallthru
      _
    %v39 = vld [vmem:[#allocation2] sm:$0xff]
    %v40 = vld [vmem:[#allocation2 + $0x8] sm:$0xff]
    %v41 = vld [vmem:[#allocation2 + $0x10] sm:$0xff]
    %v42 = vld [vmem:[#allocation2 + $0x18] sm:$0xff]
    %v43 = vld [vmem:[#allocation4] sm:$0xff]
    %v44 = vld [vmem:[#allocation4 + $0x8] sm:$0xff]
    %v45 = vld [vmem:[#allocation4 + $0x10] sm:$0xff]
    %v46 = vld [vmem:[#allocation4 + $0x18] sm:$0xff]
    %v47 = vld [vmem:[#allocation4 + $0x20] sm:$0xff]
    %v48 = vld [vmem:[#allocation4 + $0x28] sm:$0xff]
    %v49 = vld [vmem:[#allocation4 + $0x30] sm:$0xff]
    %v50 = vld [vmem:[#allocation4 + $0x38] sm:$0xff]
    %vm51 = vcmask 261120
    %v53 = vsel %vm51, %v39, 0
    %v56 = vsel %vm51, %v40, 0
    %v59 = vsel %vm51, %v41, 0
    %v62 = vsel %vm51, %v42, 0
    %v64 = vand.u32 %v44, 4294901760
    %65 = vmatprep.subr.mxu0 %v64
    %v66 = vand.u32 %v43, 4294901760
    %67 = vmatpush1.msra.mxu0 %v66
    %v68 = vand.u32 %v46, 4294901760
    %69 = vmatprep.subr.mxu0 %v68
    %v70 = vand.u32 %v45, 4294901760
    %71 = vmatpush1.msra.mxu0 %v70
    %v72 = vand.u32 %v48, 4294901760
    %73 = vmatprep.subr.mxu0 %v72
    %v74 = vand.u32 %v47, 4294901760
    %75 = vmatpush1.msra.mxu0 %v74
    %v76 = vand.u32 %v50, 4294901760
    %77 = vmatprep.subr.mxu0 %v76
    %v78 = vand.u32 %v49, 4294901760
    %79 = vmatpush1.msra.mxu0 %v78
    %80 = vmatprep.subr.mxu0 0.0
    %81 = vmatpush1.msra.mxu0 0.0
    %82 = vmatprep.subr.mxu0 0.0
    %83 = vmatpush1.msra.mxu0 0.0
    %84 = vmatprep.subr.mxu0 0.0
    %85 = vmatpush1.msra.mxu0 0.0
    %86 = vmatprep.subr.mxu0 0.0
    %87 = vmatpush1.msra.mxu0 0.0
    %88 = vmatprep.subr.mxu0 0.0
    %89 = vmatpush1.msra.mxu0 0.0
    %90 = vmatprep.subr.mxu0 0.0
    %91 = vmatpush1.msra.mxu0 0.0
    %92 = vmatprep.subr.mxu0 0.0
    %93 = vmatpush1.msra.mxu0 0.0
    %94 = vmatprep.subr.mxu0 0.0
    %95 = vmatpush1.msra.mxu0 0.0
    %96 = vmatprep.subr.mxu0 0.0
    %97 = vmatpush1.msra.mxu0 0.0
    %98 = vmatprep.subr.mxu0 0.0
    %99 = vmatpush1.msra.mxu0 0.0
    %100 = vmatprep.subr.mxu0 0.0
    %101 = vmatpush1.msra.mxu0 0.0
    %102 = vmatprep.subr.mxu0 0.0
    %103 = vmatpush1.msra.mxu0 0.0
    %104 = vmatprep.subr.mxu0 0.0
    %105 = vmatpush1.msra.mxu0 0.0
    %106 = vmatprep.subr.mxu0 0.0
    %107 = vmatpush1.msra.mxu0 0.0
    %108 = vmatprep.subr.mxu0 0.0
    %109 = vmatpush1.msra.mxu0 0.0
    %110 = vmatprep.subr.mxu0 0.0
    %111 = vmatpush1.msra.mxu0 0.0
    %112 = vmatprep.subr.mxu0 0.0
    %113 = vmatpush1.msra.mxu0 0.0
    %114 = vmatprep.subr.mxu0 0.0
    %115 = vmatpush1.msra.mxu0 0.0
    %116 = vmatprep.subr.mxu0 0.0
    %117 = vmatpush1.msra.mxu0 0.0
    %118 = vmatprep.subr.mxu0 0.0
    %119 = vmatpush1.msra.mxu0 0.0
    %120 = vmatprep.subr.mxu0 0.0
    %121 = vmatpush1.msra.mxu0 0.0
    %122 = vmatprep.subr.mxu0 0.0
    %123 = vmatpush1.msra.mxu0 0.0
    %124 = vmatprep.subr.mxu0 0.0
    %125 = vmatpush1.msra.mxu0 0.0
    %126 = vmatprep.subr.mxu0 0.0
    %127 = vmatpush1.msra.mxu0 0.0
    %128 = vmatprep.subr.mxu0 0.0
    %129 = vmatpush1.msra.mxu0 0.0
    %130 = vmatprep.subr.mxu0 0.0
    %131 = vmatpush1.msra.mxu0 0.0
    %132 = vmatprep.subr.mxu0 0.0
    %133 = vmatpush1.msra.mxu0 0.0
    %134 = vmatprep.subr.mxu0 0.0
    %135 = vmatpush1.msra.mxu0 0.0
    %136 = vmatprep.mubr.f32.mxu0 0.0
    %v137 = vand.u32 %v53, 4294901760
    %v138 = vsub.f32 %v53, %v137
    %v139 = vand.u32 %v138, 4294901760
    %v140 = vsub.f32 %v138, %v139
    %v141 = vand.u32 %v140, 4294901760
    %142 = vmatmul.mubr.f32.gmra.mrb[0].mxu0 %v141
    %v143 = vpop.f32.mrb[0].mxu0
    %v144 = vadd.f32 0.0, %v143
    %v145 = vpop.f32.mrb[0].mxu0
    %v146 = vadd.f32 0.0, %v145
    %147 = vmatprep.mubr.f32.mxu0 0.0
    %v148 = vand.u32 %v56, 4294901760
    %v149 = vsub.f32 %v56, %v148
    %v150 = vand.u32 %v149, 4294901760
    %v151 = vsub.f32 %v149, %v150
    %v152 = vand.u32 %v151, 4294901760
    %153 = vmatmul.mubr.f32.gmra.mrb[0].mxu0 %v152
    %v154 = vpop.f32.mrb[0].mxu0
    %v155 = vadd.f32 0.0, %v154
    %v156 = vpop.f32.mrb[0].mxu0
    %v157 = vadd.f32 0.0, %v156
    %158 = vmatprep.mubr.f32.mxu0 0.0
    %v159 = vand.u32 %v59, 4294901760
    %v160 = vsub.f32 %v59, %v159
    %v161 = vand.u32 %v160, 4294901760
    %v162 = vsub.f32 %v160, %v161
    %v163 = vand.u32 %v162, 4294901760
    %164 = vmatmul.mubr.f32.gmra.mrb[0].mxu0 %v163
    %v165 = vpop.f32.mrb[0].mxu0
    %v166 = vadd.f32 0.0, %v165
    %v167 = vpop.f32.mrb[0].mxu0
    %v168 = vadd.f32 0.0, %v167
    %169 = vmatprep.mubr.f32.mxu0 0.0
    %v170 = vand.u32 %v62, 4294901760
    %v171 = vsub.f32 %v62, %v170
    %v172 = vand.u32 %v171, 4294901760
    %v173 = vsub.f32 %v171, %v172
    %v174 = vand.u32 %v173, 4294901760
    %175 = vmatmul.mubr.f32.gmra.mrb[0].mxu0 %v174
    %v176 = vpop.f32.mrb[0].mxu0
    %v177 = vadd.f32 0.0, %v176
    %v178 = vpop.f32.mrb[0].mxu0
    %v179 = vadd.f32 0.0, %v178
    %180 = vdwg.mxu0
    %v181 = vand.u32 %v44, 4294901760
    %v182 = vsub.f32 %v44, %v181
    %v183 = vand.u32 %v182, 4294901760
    %v184 = vsub.f32 %v182, %v183
    %v185 = vand.u32 %v184, 4294901760
    %186 = vmatprep.subr.mxu0 %v185
    %v187 = vand.u32 %v43, 4294901760
    %v188 = vsub.f32 %v43, %v187
    %v189 = vand.u32 %v188, 4294901760
    %v190 = vsub.f32 %v188, %v189
    %v191 = vand.u32 %v190, 4294901760
    %192 = vmatpush1.msra.mxu0 %v191
    %v193 = vand.u32 %v46, 4294901760
    %v194 = vsub.f32 %v46, %v193
    %v195 = vand.u32 %v194, 4294901760
    %v196 = vsub.f32 %v194, %v195
    %v197 = vand.u32 %v196, 4294901760
    %198 = vmatprep.subr.mxu0 %v197
    %v199 = vand.u32 %v45, 4294901760
    %v200 = vsub.f32 %v45, %v199
    %v201 = vand.u32 %v200, 4294901760
    %v202 = vsub.f32 %v200, %v201
    %v203 = vand.u32 %v202, 4294901760
    %204 = vmatpush1.msra.mxu0 %v203
    %v205 = vand.u32 %v48, 4294901760
    %v206 = vsub.f32 %v48, %v205
    %v207 = vand.u32 %v206, 4294901760
    %v208 = vsub.f32 %v206, %v207
    %v209 = vand.u32 %v208, 4294901760
    %210 = vmatprep.subr.mxu0 %v209
    %v211 = vand.u32 %v47, 4294901760
    %v212 = vsub.f32 %v47, %v211
    %v213 = vand.u32 %v212, 4294901760
    %v214 = vsub.f32 %v212, %v213
    %v215 = vand.u32 %v214, 4294901760
    %216 = vmatpush1.msra.mxu0 %v215
    %v217 = vand.u32 %v50, 4294901760
    %v218 = vsub.f32 %v50, %v217
    %v219 = vand.u32 %v218, 4294901760
    %v220 = vsub.f32 %v218, %v219
    %v221 = vand.u32 %v220, 4294901760
    %222 = vmatprep.subr.mxu0 %v221
    %v223 = vand.u32 %v49, 4294901760
    %v224 = vsub.f32 %v49, %v223
    %v225 = vand.u32 %v224, 4294901760
    %v226 = vsub.f32 %v224, %v225
    %v227 = vand.u32 %v226, 4294901760
    %228 = vmatpush1.msra.mxu0 %v227
    %229 = vmatprep.subr.mxu0 0.0
    %230 = vmatpush1.msra.mxu0 0.0
    %231 = vmatprep.subr.mxu0 0.0
    %232 = vmatpush1.msra.mxu0 0.0
    %233 = vmatprep.subr.mxu0 0.0
    %234 = vmatpush1.msra.mxu0 0.0
    %235 = vmatprep.subr.mxu0 0.0
    %236 = vmatpush1.msra.mxu0 0.0
    %237 = vmatprep.subr.mxu0 0.0
    %238 = vmatpush1.msra.mxu0 0.0
    %239 = vmatprep.subr.mxu0 0.0
    %240 = vmatpush1.msra.mxu0 0.0
    %241 = vmatprep.subr.mxu0 0.0
    %242 = vmatpush1.msra.mxu0 0.0
    %243 = vmatprep.subr.mxu0 0.0
    %244 = vmatpush1.msra.mxu0 0.0
    %245 = vmatprep.subr.mxu0 0.0
    %246 = vmatpush1.msra.mxu0 0.0
    %247 = vmatprep.subr.mxu0 0.0
    %248 = vmatpush1.msra.mxu0 0.0
    %249 = vmatprep.subr.mxu0 0.0
    %250 = vmatpush1.msra.mxu0 0.0
    %251 = vmatprep.subr.mxu0 0.0
    %252 = vmatpush1.msra.mxu0 0.0
    %253 = vmatprep.subr.mxu0 0.0
    %254 = vmatpush1.msra.mxu0 0.0
    %255 = vmatprep.subr.mxu0 0.0
    %256 = vmatpush1.msra.mxu0 0.0
    %257 = vmatprep.subr.mxu0 0.0
    %258 = vmatpush1.msra.mxu0 0.0
    %259 = vmatprep.subr.mxu0 0.0
    %260 = vmatpush1.msra.mxu0 0.0
    %261 = vmatprep.subr.mxu0 0.0
    %262 = vmatpush1.msra.mxu0 0.0
    %263 = vmatprep.subr.mxu0 0.0
    %264 = vmatpush1.msra.mxu0 0.0
    %265 = vmatprep.subr.mxu0 0.0
    %266 = vmatpush1.msra.mxu0 0.0
    %267 = vmatprep.subr.mxu0 0.0
    %268 = vmatpush1.msra.mxu0 0.0
    %269 = vmatprep.subr.mxu0 0.0
    %270 = vmatpush1.msra.mxu0 0.0
    %271 = vmatprep.subr.mxu0 0.0
    %272 = vmatpush1.msra.mxu0 0.0
    %273 = vmatprep.subr.mxu0 0.0
    %274 = vmatpush1.msra.mxu0 0.0
    %275 = vmatprep.subr.mxu0 0.0
    %276 = vmatpush1.msra.mxu0 0.0
    %277 = vmatprep.subr.mxu0 0.0
    %278 = vmatpush1.msra.mxu0 0.0
    %279 = vmatprep.subr.mxu0 0.0
    %280 = vmatpush1.msra.mxu0 0.0
    %281 = vmatprep.subr.mxu0 0.0
    %282 = vmatpush1.msra.mxu0 0.0
    %283 = vmatprep.subr.mxu0 0.0
    %284 = vmatpush1.msra.mxu0 0.0
    %285 = vmatprep.mubr.f32.mxu0 0.0
    %v286 = vand.u32 %v53, 4294901760
    %287 = vmatmul.mubr.f32.gmra.mrb[0].mxu0 %v286
    %v288 = vpop.f32.mrb[0].mxu0
    %v289 = vadd.f32 %v144, %v288
    %v290 = vpop.f32.mrb[0].mxu0
    %v291 = vadd.f32 %v146, %v290
    %292 = vmatprep.mubr.f32.mxu0 0.0
    %v293 = vand.u32 %v56, 4294901760
    %294 = vmatmul.mubr.f32.gmra.mrb[0].mxu0 %v293
    %v295 = vpop.f32.mrb[0].mxu0
    %v296 = vadd.f32 %v155, %v295
    %v297 = vpop.f32.mrb[0].mxu0
    %v298 = vadd.f32 %v157, %v297
    %299 = vmatprep.mubr.f32.mxu0 0.0
    %v300 = vand.u32 %v59, 4294901760
    %301 = vmatmul.mubr.f32.gmra.mrb[0].mxu0 %v300
    %v302 = vpop.f32.mrb[0].mxu0
    %v303 = vadd.f32 %v166, %v302
    %v304 = vpop.f32.mrb[0].mxu0
    %v305 = vadd.f32 %v168, %v304
    %306 = vmatprep.mubr.f32.mxu0 0.0
    %v307 = vand.u32 %v62, 4294901760
    %308 = vmatmul.mubr.f32.gmra.mrb[0].mxu0 %v307
    %v309 = vpop.f32.mrb[0].mxu0
    %v310 = vadd.f32 %v177, %v309
    %v311 = vpop.f32.mrb[0].mxu0
    %v312 = vadd.f32 %v179, %v311
    %313 = vdwg.mxu0
    %v314 = vand.u32 %v44, 4294901760
    %v315 = vsub.f32 %v44, %v314
    %316 = vmatprep.subr.mxu0 %v315
    %v317 = vand.u32 %v43, 4294901760
    %v318 = vsub.f32 %v43, %v317
    %319 = vmatpush1.msra.mxu0 %v318
    %v320 = vand.u32 %v46, 4294901760
    %v321 = vsub.f32 %v46, %v320
    %322 = vmatprep.subr.mxu0 %v321
    %v323 = vand.u32 %v45, 4294901760
    %v324 = vsub.f32 %v45, %v323
    %325 = vmatpush1.msra.mxu0 %v324
    %v326 = vand.u32 %v48, 4294901760
    %v327 = vsub.f32 %v48, %v326
    %328 = vmatprep.subr.mxu0 %v327
    %v329 = vand.u32 %v47, 4294901760
    %v330 = vsub.f32 %v47, %v329
    %331 = vmatpush1.msra.mxu0 %v330
    %v332 = vand.u32 %v50, 4294901760
    %v333 = vsub.f32 %v50, %v332
    %334 = vmatprep.subr.mxu0 %v333
    %v335 = vand.u32 %v49, 4294901760
    %v336 = vsub.f32 %v49, %v335
    %337 = vmatpush1.msra.mxu0 %v336
    %338 = vmatprep.subr.mxu0 0.0
    %339 = vmatpush1.msra.mxu0 0.0
    %340 = vmatprep.subr.mxu0 0.0
    %341 = vmatpush1.msra.mxu0 0.0
    %342 = vmatprep.subr.mxu0 0.0
    %343 = vmatpush1.msra.mxu0 0.0
    %344 = vmatprep.subr.mxu0 0.0
    %345 = vmatpush1.msra.mxu0 0.0
    %346 = vmatprep.subr.mxu0 0.0
    %347 = vmatpush1.msra.mxu0 0.0
    %348 = vmatprep.subr.mxu0 0.0
    %349 = vmatpush1.msra.mxu0 0.0
    %350 = vmatprep.subr.mxu0 0.0
    %351 = vmatpush1.msra.mxu0 0.0
    %352 = vmatprep.subr.mxu0 0.0
    %353 = vmatpush1.msra.mxu0 0.0
    %354 = vmatprep.subr.mxu0 0.0
    %355 = vmatpush1.msra.mxu0 0.0
    %356 = vmatprep.subr.mxu0 0.0
    %357 = vmatpush1.msra.mxu0 0.0
    %358 = vmatprep.subr.mxu0 0.0
    %359 = vmatpush1.msra.mxu0 0.0
    %360 = vmatprep.subr.mxu0 0.0
    %361 = vmatpush1.msra.mxu0 0.0
    %362 = vmatprep.subr.mxu0 0.0
    %363 = vmatpush1.msra.mxu0 0.0
    %364 = vmatprep.subr.mxu0 0.0
    %365 = vmatpush1.msra.mxu0 0.0
    %366 = vmatprep.subr.mxu0 0.0
    %367 = vmatpush1.msra.mxu0 0.0
    %368 = vmatprep.subr.mxu0 0.0
    %369 = vmatpush1.msra.mxu0 0.0
    %370 = vmatprep.subr.mxu0 0.0
    %371 = vmatpush1.msra.mxu0 0.0
    %372 = vmatprep.subr.mxu0 0.0
    %373 = vmatpush1.msra.mxu0 0.0
    %374 = vmatprep.subr.mxu0 0.0
    %375 = vmatpush1.msra.mxu0 0.0
    %376 = vmatprep.subr.mxu0 0.0
    %377 = vmatpush1.msra.mxu0 0.0
    %378 = vmatprep.subr.mxu0 0.0
    %379 = vmatpush1.msra.mxu0 0.0
    %380 = vmatprep.subr.mxu0 0.0
    %381 = vmatpush1.msra.mxu0 0.0
    %382 = vmatprep.subr.mxu0 0.0
    %383 = vmatpush1.msra.mxu0 0.0
    %384 = vmatprep.subr.mxu0 0.0
    %385 = vmatpush1.msra.mxu0 0.0
    %386 = vmatprep.subr.mxu0 0.0
    %387 = vmatpush1.msra.mxu0 0.0
    %388 = vmatprep.subr.mxu0 0.0
    %389 = vmatpush1.msra.mxu0 0.0
    %390 = vmatprep.subr.mxu0 0.0
    %391 = vmatpush1.msra.mxu0 0.0
    %392 = vmatprep.subr.mxu0 0.0
    %393 = vmatpush1.msra.mxu0 0.0
    %394 = vmatprep.mubr.f32.mxu0 0.0
    %v395 = vand.u32 %v53, 4294901760
    %v396 = vsub.f32 %v53, %v395
    %397 = vmatmul.mubr.f32.gmra.mrb[0].mxu0 %v396
    %v398 = vpop.f32.mrb[0].mxu0
    %v399 = vadd.f32 %v289, %v398
    %v400 = vpop.f32.mrb[0].mxu0
    %v401 = vadd.f32 %v291, %v400
    %402 = vmatprep.mubr.f32.mxu0 0.0
    %v403 = vand.u32 %v56, 4294901760
    %v404 = vsub.f32 %v56, %v403
    %405 = vmatmul.mubr.f32.gmra.mrb[0].mxu0 %v404
    %v406 = vpop.f32.mrb[0].mxu0
    %v407 = vadd.f32 %v296, %v406
    %v408 = vpop.f32.mrb[0].mxu0
    %v409 = vadd.f32 %v298, %v408
    %410 = vmatprep.mubr.f32.mxu0 0.0
    %v411 = vand.u32 %v59, 4294901760
    %v412 = vsub.f32 %v59, %v411
    %413 = vmatmul.mubr.f32.gmra.mrb[0].mxu0 %v412
    %v414 = vpop.f32.mrb[0].mxu0
    %v415 = vadd.f32 %v303, %v414
    %v416 = vpop.f32.mrb[0].mxu0
    %v417 = vadd.f32 %v305, %v416
    %418 = vmatprep.mubr.f32.mxu0 0.0
    %v419 = vand.u32 %v62, 4294901760
    %v420 = vsub.f32 %v62, %v419
    %421 = vmatmul.mubr.f32.gmra.mrb[0].mxu0 %v420
    %v422 = vpop.f32.mrb[0].mxu0
    %v423 = vadd.f32 %v310, %v422
    %v424 = vpop.f32.mrb[0].mxu0
    %v425 = vadd.f32 %v312, %v424
    %426 = vdwg.mxu0
    %v427 = vand.u32 %v44, 4294901760
    %428 = vmatprep.subr.mxu0 %v427
    %v429 = vand.u32 %v43, 4294901760
    %430 = vmatpush1.msra.mxu0 %v429
    %v431 = vand.u32 %v46, 4294901760
    %432 = vmatprep.subr.mxu0 %v431
    %v433 = vand.u32 %v45, 4294901760
    %434 = vmatpush1.msra.mxu0 %v433
    %v435 = vand.u32 %v48, 4294901760
    %436 = vmatprep.subr.mxu0 %v435
    %v437 = vand.u32 %v47, 4294901760
    %438 = vmatpush1.msra.mxu0 %v437
    %v439 = vand.u32 %v50, 4294901760
    %440 = vmatprep.subr.mxu0 %v439
    %v441 = vand.u32 %v49, 4294901760
    %442 = vmatpush1.msra.mxu0 %v441
    %443 = vmatprep.subr.mxu0 0.0
    %444 = vmatpush1.msra.mxu0 0.0
    %445 = vmatprep.subr.mxu0 0.0
    %446 = vmatpush1.msra.mxu0 0.0
    %447 = vmatprep.subr.mxu0 0.0
    %448 = vmatpush1.msra.mxu0 0.0
    %449 = vmatprep.subr.mxu0 0.0
    %450 = vmatpush1.msra.mxu0 0.0
    %451 = vmatprep.subr.mxu0 0.0
    %452 = vmatpush1.msra.mxu0 0.0
    %453 = vmatprep.subr.mxu0 0.0
    %454 = vmatpush1.msra.mxu0 0.0
    %455 = vmatprep.subr.mxu0 0.0
    %456 = vmatpush1.msra.mxu0 0.0
    %457 = vmatprep.subr.mxu0 0.0
    %458 = vmatpush1.msra.mxu0 0.0
    %459 = vmatprep.subr.mxu0 0.0
    %460 = vmatpush1.msra.mxu0 0.0
    %461 = vmatprep.subr.mxu0 0.0
    %462 = vmatpush1.msra.mxu0 0.0
    %463 = vmatprep.subr.mxu0 0.0
    %464 = vmatpush1.msra.mxu0 0.0
    %465 = vmatprep.subr.mxu0 0.0
    %466 = vmatpush1.msra.mxu0 0.0
    %467 = vmatprep.subr.mxu0 0.0
    %468 = vmatpush1.msra.mxu0 0.0
    %469 = vmatprep.subr.mxu0 0.0
    %470 = vmatpush1.msra.mxu0 0.0
    %471 = vmatprep.subr.mxu0 0.0
    %472 = vmatpush1.msra.mxu0 0.0
    %473 = vmatprep.subr.mxu0 0.0
    %474 = vmatpush1.msra.mxu0 0.0
    %475 = vmatprep.subr.mxu0 0.0
    %476 = vmatpush1.msra.mxu0 0.0
    %477 = vmatprep.subr.mxu0 0.0
    %478 = vmatpush1.msra.mxu0 0.0
    %479 = vmatprep.subr.mxu0 0.0
    %480 = vmatpush1.msra.mxu0 0.0
    %481 = vmatprep.subr.mxu0 0.0
    %482 = vmatpush1.msra.mxu0 0.0
    %483 = vmatprep.subr.mxu0 0.0
    %484 = vmatpush1.msra.mxu0 0.0
    %485 = vmatprep.subr.mxu0 0.0
    %486 = vmatpush1.msra.mxu0 0.0
    %487 = vmatprep.subr.mxu0 0.0
    %488 = vmatpush1.msra.mxu0 0.0
    %489 = vmatprep.subr.mxu0 0.0
    %490 = vmatpush1.msra.mxu0 0.0
    %491 = vmatprep.subr.mxu0 0.0
    %492 = vmatpush1.msra.mxu0 0.0
    %493 = vmatprep.subr.mxu0 0.0
    %494 = vmatpush1.msra.mxu0 0.0
    %495 = vmatprep.subr.mxu0 0.0
    %496 = vmatpush1.msra.mxu0 0.0
    %497 = vmatprep.subr.mxu0 0.0
    %498 = vmatpush1.msra.mxu0 0.0
    %499 = vmatprep.mubr.f32.mxu0 0.0
    %v500 = vand.u32 %v53, 4294901760
    %v501 = vsub.f32 %v53, %v500
    %v502 = vand.u32 %v501, 4294901760
    %503 = vmatmul.mubr.f32.gmra.mrb[0].mxu0 %v502
    %v504 = vpop.f32.mrb[0].mxu0
    %v505 = vadd.f32 %v399, %v504
    %v506 = vpop.f32.mrb[0].mxu0
    %v507 = vadd.f32 %v401, %v506
    %508 = vmatprep.mubr.f32.mxu0 0.0
    %v509 = vand.u32 %v56, 4294901760
    %v510 = vsub.f32 %v56, %v509
    %v511 = vand.u32 %v510, 4294901760
    %512 = vmatmul.mubr.f32.gmra.mrb[0].mxu0 %v511
    %v513 = vpop.f32.mrb[0].mxu0
    %v514 = vadd.f32 %v407, %v513
    %v515 = vpop.f32.mrb[0].mxu0
    %v516 = vadd.f32 %v409, %v515
    %517 = vmatprep.mubr.f32.mxu0 0.0
    %v518 = vand.u32 %v59, 4294901760
    %v519 = vsub.f32 %v59, %v518
    %v520 = vand.u32 %v519, 4294901760
    %521 = vmatmul.mubr.f32.gmra.mrb[0].mxu0 %v520
    %v522 = vpop.f32.mrb[0].mxu0
    %v523 = vadd.f32 %v415, %v522
    %v524 = vpop.f32.mrb[0].mxu0
    %v525 = vadd.f32 %v417, %v524
    %526 = vmatprep.mubr.f32.mxu0 0.0
    %v527 = vand.u32 %v62, 4294901760
    %v528 = vsub.f32 %v62, %v527
    %v529 = vand.u32 %v528, 4294901760
    %530 = vmatmul.mubr.f32.gmra.mrb[0].mxu0 %v529
    %v531 = vpop.f32.mrb[0].mxu0
    %v532 = vadd.f32 %v423, %v531
    %v533 = vpop.f32.mrb[0].mxu0
    %v534 = vadd.f32 %v425, %v533
    %535 = vdwg.mxu0
    %v536 = vand.u32 %v44, 4294901760
    %v537 = vsub.f32 %v44, %v536
    %v538 = vand.u32 %v537, 4294901760
    %539 = vmatprep.subr.mxu0 %v538
    %v540 = vand.u32 %v43, 4294901760
    %v541 = vsub.f32 %v43, %v540
    %v542 = vand.u32 %v541, 4294901760
    %543 = vmatpush1.msra.mxu0 %v542
    %v544 = vand.u32 %v46, 4294901760
    %v545 = vsub.f32 %v46, %v544
    %v546 = vand.u32 %v545, 4294901760
    %547 = vmatprep.subr.mxu0 %v546
    %v548 = vand.u32 %v45, 4294901760
    %v549 = vsub.f32 %v45, %v548
    %v550 = vand.u32 %v549, 4294901760
    %551 = vmatpush1.msra.mxu0 %v550
    %v552 = vand.u32 %v48, 4294901760
    %v553 = vsub.f32 %v48, %v552
    %v554 = vand.u32 %v553, 4294901760
    %555 = vmatprep.subr.mxu0 %v554
    %v556 = vand.u32 %v47, 4294901760
    %v557 = vsub.f32 %v47, %v556
    %v558 = vand.u32 %v557, 4294901760
    %559 = vmatpush1.msra.mxu0 %v558
    %v560 = vand.u32 %v50, 4294901760
    %v561 = vsub.f32 %v50, %v560
    %v562 = vand.u32 %v561, 4294901760
    %563 = vmatprep.subr.mxu0 %v562
    %v564 = vand.u32 %v49, 4294901760
    %v565 = vsub.f32 %v49, %v564
    %v566 = vand.u32 %v565, 4294901760
    %567 = vmatpush1.msra.mxu0 %v566
    %568 = vmatprep.subr.mxu0 0.0
    %569 = vmatpush1.msra.mxu0 0.0
    %570 = vmatprep.subr.mxu0 0.0
    %571 = vmatpush1.msra.mxu0 0.0
    %572 = vmatprep.subr.mxu0 0.0
    %573 = vmatpush1.msra.mxu0 0.0
    %574 = vmatprep.subr.mxu0 0.0
    %575 = vmatpush1.msra.mxu0 0.0
    %576 = vmatprep.subr.mxu0 0.0
    %577 = vmatpush1.msra.mxu0 0.0
    %578 = vmatprep.subr.mxu0 0.0
    %579 = vmatpush1.msra.mxu0 0.0
    %580 = vmatprep.subr.mxu0 0.0
    %581 = vmatpush1.msra.mxu0 0.0
    %582 = vmatprep.subr.mxu0 0.0
    %583 = vmatpush1.msra.mxu0 0.0
    %584 = vmatprep.subr.mxu0 0.0
    %585 = vmatpush1.msra.mxu0 0.0
    %586 = vmatprep.subr.mxu0 0.0
    %587 = vmatpush1.msra.mxu0 0.0
    %588 = vmatprep.subr.mxu0 0.0
    %589 = vmatpush1.msra.mxu0 0.0
    %590 = vmatprep.subr.mxu0 0.0
    %591 = vmatpush1.msra.mxu0 0.0
    %592 = vmatprep.subr.mxu0 0.0
    %593 = vmatpush1.msra.mxu0 0.0
    %594 = vmatprep.subr.mxu0 0.0
    %595 = vmatpush1.msra.mxu0 0.0
    %596 = vmatprep.subr.mxu0 0.0
    %597 = vmatpush1.msra.mxu0 0.0
    %598 = vmatprep.subr.mxu0 0.0
    %599 = vmatpush1.msra.mxu0 0.0
    %600 = vmatprep.subr.mxu0 0.0
    %601 = vmatpush1.msra.mxu0 0.0
    %602 = vmatprep.subr.mxu0 0.0
    %603 = vmatpush1.msra.mxu0 0.0
    %604 = vmatprep.subr.mxu0 0.0
    %605 = vmatpush1.msra.mxu0 0.0
    %606 = vmatprep.subr.mxu0 0.0
    %607 = vmatpush1.msra.mxu0 0.0
    %608 = vmatprep.subr.mxu0 0.0
    %609 = vmatpush1.msra.mxu0 0.0
    %610 = vmatprep.subr.mxu0 0.0
    %611 = vmatpush1.msra.mxu0 0.0
    %612 = vmatprep.subr.mxu0 0.0
    %613 = vmatpush1.msra.mxu0 0.0
    %614 = vmatprep.subr.mxu0 0.0
    %615 = vmatpush1.msra.mxu0 0.0
    %616 = vmatprep.subr.mxu0 0.0
    %617 = vmatpush1.msra.mxu0 0.0
    %618 = vmatprep.subr.mxu0 0.0
    %619 = vmatpush1.msra.mxu0 0.0
    %620 = vmatprep.subr.mxu0 0.0
    %621 = vmatpush1.msra.mxu0 0.0
    %622 = vmatprep.subr.mxu0 0.0
    %623 = vmatpush1.msra.mxu0 0.0
    %624 = vmatprep.mubr.f32.mxu0 0.0
    %v625 = vand.u32 %v53, 4294901760
    %626 = vmatmul.mubr.f32.gmra.mrb[0].mxu0 %v625
    %v627 = vpop.f32.mrb[0].mxu0
    %v628 = vadd.f32 %v505, %v627
    %v629 = vpop.f32.mrb[0].mxu0
    %v630 = vadd.f32 %v507, %v629
    %631 = vmatprep.mubr.f32.mxu0 0.0
    %v632 = vand.u32 %v56, 4294901760
    %633 = vmatmul.mubr.f32.gmra.mrb[0].mxu0 %v632
    %v634 = vpop.f32.mrb[0].mxu0
    %v635 = vadd.f32 %v514, %v634
    %v636 = vpop.f32.mrb[0].mxu0
    %v637 = vadd.f32 %v516, %v636
    %638 = vmatprep.mubr.f32.mxu0 0.0
    %v639 = vand.u32 %v59, 4294901760
    %640 = vmatmul.mubr.f32.gmra.mrb[0].mxu0 %v639
    %v641 = vpop.f32.mrb[0].mxu0
    %v642 = vadd.f32 %v523, %v641
    %v643 = vpop.f32.mrb[0].mxu0
    %v644 = vadd.f32 %v525, %v643
    %645 = vmatprep.mubr.f32.mxu0 0.0
    %v646 = vand.u32 %v62, 4294901760
    %647 = vmatmul.mubr.f32.gmra.mrb[0].mxu0 %v646
    %v648 = vpop.f32.mrb[0].mxu0
    %v649 = vadd.f32 %v532, %v648
    %v650 = vpop.f32.mrb[0].mxu0
    %v651 = vadd.f32 %v534, %v650
    %652 = vdwg.mxu0
    %v653 = vand.u32 %v44, 4294901760
    %654 = vmatprep.subr.mxu0 %v653
    %v655 = vand.u32 %v43, 4294901760
    %656 = vmatpush1.msra.mxu0 %v655
    %v657 = vand.u32 %v46, 4294901760
    %658 = vmatprep.subr.mxu0 %v657
    %v659 = vand.u32 %v45, 4294901760
    %660 = vmatpush1.msra.mxu0 %v659
    %v661 = vand.u32 %v48, 4294901760
    %662 = vmatprep.subr.mxu0 %v661
    %v663 = vand.u32 %v47, 4294901760
    %664 = vmatpush1.msra.mxu0 %v663
    %v665 = vand.u32 %v50, 4294901760
    %666 = vmatprep.subr.mxu0 %v665
    %v667 = vand.u32 %v49, 4294901760
    %668 = vmatpush1.msra.mxu0 %v667
    %669 = vmatprep.subr.mxu0 0.0
    %670 = vmatpush1.msra.mxu0 0.0
    %671 = vmatprep.subr.mxu0 0.0
    %672 = vmatpush1.msra.mxu0 0.0
    %673 = vmatprep.subr.mxu0 0.0
    %674 = vmatpush1.msra.mxu0 0.0
    %675 = vmatprep.subr.mxu0 0.0
    %676 = vmatpush1.msra.mxu0 0.0
    %677 = vmatprep.subr.mxu0 0.0
    %678 = vmatpush1.msra.mxu0 0.0
    %679 = vmatprep.subr.mxu0 0.0
    %680 = vmatpush1.msra.mxu0 0.0
    %681 = vmatprep.subr.mxu0 0.0
    %682 = vmatpush1.msra.mxu0 0.0
    %683 = vmatprep.subr.mxu0 0.0
    %684 = vmatpush1.msra.mxu0 0.0
    %685 = vmatprep.subr.mxu0 0.0
    %686 = vmatpush1.msra.mxu0 0.0
    %687 = vmatprep.subr.mxu0 0.0
    %688 = vmatpush1.msra.mxu0 0.0
    %689 = vmatprep.subr.mxu0 0.0
    %690 = vmatpush1.msra.mxu0 0.0
    %691 = vmatprep.subr.mxu0 0.0
    %692 = vmatpush1.msra.mxu0 0.0
    %693 = vmatprep.subr.mxu0 0.0
    %694 = vmatpush1.msra.mxu0 0.0
    %695 = vmatprep.subr.mxu0 0.0
    %696 = vmatpush1.msra.mxu0 0.0
    %697 = vmatprep.subr.mxu0 0.0
    %698 = vmatpush1.msra.mxu0 0.0
    %699 = vmatprep.subr.mxu0 0.0
    %700 = vmatpush1.msra.mxu0 0.0
    %701 = vmatprep.subr.mxu0 0.0
    %702 = vmatpush1.msra.mxu0 0.0
    %703 = vmatprep.subr.mxu0 0.0
    %704 = vmatpush1.msra.mxu0 0.0
    %705 = vmatprep.subr.mxu0 0.0
    %706 = vmatpush1.msra.mxu0 0.0
    %707 = vmatprep.subr.mxu0 0.0
    %708 = vmatpush1.msra.mxu0 0.0
    %709 = vmatprep.subr.mxu0 0.0
    %710 = vmatpush1.msra.mxu0 0.0
    %711 = vmatprep.subr.mxu0 0.0
    %712 = vmatpush1.msra.mxu0 0.0
    %713 = vmatprep.subr.mxu0 0.0
    %714 = vmatpush1.msra.mxu0 0.0
    %715 = vmatprep.subr.mxu0 0.0
    %716 = vmatpush1.msra.mxu0 0.0
    %717 = vmatprep.subr.mxu0 0.0
    %718 = vmatpush1.msra.mxu0 0.0
    %719 = vmatprep.subr.mxu0 0.0
    %720 = vmatpush1.msra.mxu0 0.0
    %721 = vmatprep.subr.mxu0 0.0
    %722 = vmatpush1.msra.mxu0 0.0
    %723 = vmatprep.subr.mxu0 0.0
    %724 = vmatpush1.msra.mxu0 0.0
    %725 = vmatprep.mubr.f32.mxu0 0.0
    %v726 = vand.u32 %v53, 4294901760
    %727 = vmatmul.mubr.f32.gmra.mrb[0].mxu0 %v726
    %v728 = vpop.f32.mrb[0].mxu0
    %v729 = vadd.f32 %v628, %v728
    %v730 = vpop.f32.mrb[0].mxu0
    %v731 = vadd.f32 %v630, %v730
    %732 = vmatprep.mubr.f32.mxu0 0.0
    %v733 = vand.u32 %v56, 4294901760
    %734 = vmatmul.mubr.f32.gmra.mrb[0].mxu0 %v733
    %v735 = vpop.f32.mrb[0].mxu0
    %v736 = vadd.f32 %v635, %v735
    %v737 = vpop.f32.mrb[0].mxu0
    %v738 = vadd.f32 %v637, %v737
    %739 = vmatprep.mubr.f32.mxu0 0.0
    %v740 = vand.u32 %v59, 4294901760
    %741 = vmatmul.mubr.f32.gmra.mrb[0].mxu0 %v740
    %v742 = vpop.f32.mrb[0].mxu0
    %v743 = vadd.f32 %v642, %v742
    %v744 = vpop.f32.mrb[0].mxu0
    %v745 = vadd.f32 %v644, %v744
    %746 = vmatprep.mubr.f32.mxu0 0.0
    %v747 = vand.u32 %v62, 4294901760
    %748 = vmatmul.mubr.f32.gmra.mrb[0].mxu0 %v747
    %v749 = vpop.f32.mrb[0].mxu0
    %v750 = vadd.f32 %v649, %v749
    %v751 = vpop.f32.mrb[0].mxu0
    %v752 = vadd.f32 %v651, %v751
    %753 = vdwg.mxu0
    %v754 = vmul.f32 %v729, %v729
    %v755 = vmul.f32 %v731, %v731
    %v756 = vmul.f32 %v736, %v736
    %v757 = vmul.f32 %v738, %v738
    %v758 = vmul.f32 %v743, %v743
    %v759 = vmul.f32 %v745, %v745
    %v760 = vmul.f32 %v750, %v750
    %v761 = vmul.f32 %v752, %v752
    %v762 = vadd.f32 %v754, %v758
    %v763 = vadd.f32 %v755, %v759
    %v764 = vadd.f32 %v756, %v760
    %v765 = vadd.f32 %v757, %v761
    %v766 = vmul.f32 %v762, 10.0
    %v767 = vmul.f32 %v763, 10.0
    %v768 = vmul.f32 %v764, 10.0
    %v769 = vmul.f32 %v765, 10.0
    %v770 = vmax.f32 %v766, %v768
    %v771 = vrot.slane %v770, 4
    %v772 = vmax.f32 %v770, %v771
    %v773 = vrot.slane %v772, 2
    %v774 = vmax.f32 %v772, %v773
    %v775 = vrot.slane %v774, 1
    %v776 = vmax.f32 %v774, %v775
    %v777 = vmax.f32 %v767, %v769
    %v778 = vrot.slane %v777, 4
    %v779 = vmax.f32 %v777, %v778
    %v780 = vrot.slane %v779, 2
    %v781 = vmax.f32 %v779, %v780
    %v782 = vrot.slane %v781, 1
    %v783 = vmax.f32 %v781, %v782
    %v784 = vsub.f32 %v766, %v776
    %v785 = vsub.f32 %v767, %v783
    %v786 = vsub.f32 %v768, %v776
    %v787 = vsub.f32 %v769, %v783
    %v788 = vmul.f32 %v784, 1.442695
    %v789 = vpow.pop %v788
    %v790 = vmul.f32 %v785, 1.442695
    %v791 = vpow.pop %v790
    %v792 = vmul.f32 %v786, 1.442695
    %v793 = vpow.pop %v792
    %v794 = vmul.f32 %v787, 1.442695
    %v795 = vpow.pop %v794
    %v796 = vadd.f32 %v789, %v793
    %v797 = vrot.slane %v796, 4
    %v798 = vadd.f32 %v796, %v797
    %v799 = vrot.slane %v798, 2
    %v800 = vadd.f32 %v798, %v799
    %v801 = vrot.slane %v800, 1
    %v802 = vadd.f32 %v800, %v801
    %v803 = vadd.f32 %v791, %v795
    %v804 = vrot.slane %v803, 4
    %v805 = vadd.f32 %v803, %v804
    %v806 = vrot.slane %v805, 2
    %v807 = vadd.f32 %v805, %v806
    %v808 = vrot.slane %v807, 1
    %v809 = vadd.f32 %v807, %v808
    %v810 = vlog2.pop %v802
    %v811 = vmul.f32 %v810, 0.6931472
    %v812 = vlog2.pop %v809
    %v813 = vmul.f32 %v812, 0.6931472
    %v814 = vadd.f32 %v776, %v811
    %v815 = vadd.f32 %v783, %v813
    %v816 = vlaneseq
    %v817 = vand.u32 %v816, 127
    %v818 = vadd.s32 %v817, 128
    %v819 = vlaneseq
    %v820 = vshrl.u32 %v819, 7
    %v821 = vmul.u32 %v820, 32
    %vm822 = vcmp.ge.s32.totalorder %v817, %v821
    %vm823 = vcmp.ge.s32.totalorder %v818, %v821
    %v824 = vadd.s32 %v821, 32
    %vm825 = vcmp.lt.s32.totalorder %v817, %v824
    %vm826 = vcmp.lt.s32.totalorder %v818, %v824
    %vm827 = vmand %vm822, %vm825
    %vm828 = vmand %vm823, %vm826
    %v829 = vsel %vm827, 1, 0
    %v830 = vsel %vm828, 1, 0
    %v831 = vcvt.s32.f32 %v829
    %v832 = vcvt.s32.f32 %v830
    %v833 = vmul.f32 %v831, %v814
    %v834 = vmul.f32 %v832, %v815
    %v835 = vadd.f32 %v833, %v834
    %836 = vadd.xlane.f32.xlu0 %v835
    %v837 = vpop.xlane.xlu0 %836
    %v838 = vmul.f32 %v837, 0.1
    %v839 = vsub.f32 1.0, %v838
    %vm840 = vcmask 7168
    %841 = vst.msk [vmem:[%s2] sm:$0xff] %vm840, %v839
    // Predicated region
    $region18: #{tpu_custom_call.1} parent=1 // pred_check
      _
    $region19: #{tpu_custom_call.1} parent=1 // pred_check_branch
      %843 = sbr.rel (0) target = $region21
    $region20: #{tpu_custom_call.1} parent=1 // pred_region
      _
    $region21: #{tpu_custom_call.1} parent=1 // pred_fallthru
      _
    // Predicated region
    $region22: #{tpu_custom_call.1} parent=1 // pred_check
      _
    $region23: #{tpu_custom_call.1} parent=1 // pred_check_branch
      %845 = sbr.rel (0) target = $region25
    $region24: #{tpu_custom_call.1} parent=1 // pred_region
      _
    $region25: #{tpu_custom_call.1} parent=1 // pred_fallthru
      _
    %846 = vsyncpa [#allocation3], 1
    %847 = vsyncpa [#allocation5], 1

</llo_original>
